<compile_context>
chip_gen: v7x
topology: tpu7x:2x2x1
jax: 0.10.0
libtpu: 0.0.40
codegen_flags: <defaults>
</compile_context>

<pallas_src>
import jax
import jax.numpy as jnp
from jax.experimental import pallas as pl
from jax.experimental.pallas import tpu as pltpu


def _round_up(x, m):
    return (x + m - 1) // m * m


# ---------------------------------------------------------------------------
# Hardware / VMEM configuration
# ---------------------------------------------------------------------------
def _tpu_config():
    """Return (physical_vmem_bytes, default_scoped_bytes, usable_budget_bytes)."""
    MiB = 1024 * 1024
    phys = 128 * MiB          # v5e / v6e physical VMEM per TensorCore
    scoped = 32 * MiB         # v6e / v7x default scoped limit
    kind = ""
    try:
        kind = jax.devices()[0].device_kind.lower()
    except Exception:
        pass
    try:
        phys = int(pltpu.get_tpu_info().vmem_capacity_bytes)
    except Exception:
        if "v7" in kind:
            phys = 64 * MiB   # v7x: 64 MiB per TensorCore
    if ("v5 lite" in kind) or ("v5e" in kind) or ("v5lite" in kind):
        scoped = 16 * MiB     # v5e default scoped VMEM limit
    budget = int(0.85 * phys)  # leave headroom for compiler-internal scratch
    return phys, scoped, budget


# ---------------------------------------------------------------------------
# Kernels
# ---------------------------------------------------------------------------
def _mlp_kernel_resident(x_ref, w1_ref, b1_ref, w2_ref, b2_ref, o_ref):
    # Single pass: the whole dff dimension is resident in VMEM.
    # bf16 operands on the MXU, f32 accumulation / bias / ReLU on the VPU.
    h = jnp.dot(x_ref[...], w1_ref[...], preferred_element_type=jnp.float32)
    h = jnp.maximum(h + b1_ref[...], 0.0)
    # dropout(p=0.0) is the identity -> omitted.
    y = jnp.dot(h.astype(w2_ref.dtype), w2_ref[...],
                preferred_element_type=jnp.float32)
    o_ref[...] = (y + b2_ref[...]).astype(o_ref.dtype)


def _mlp_kernel_chunked_f32(x_ref, w1_ref, b1_ref, w2_ref, b2_ref, o_ref):
    # dff chunked on grid axis 1; the f32 output tile doubles as the accumulator
    # (resident across j), so no scratch is needed.
    j = pl.program_id(1)
    h = jnp.dot(x_ref[...], w1_ref[...], preferred_element_type=jnp.float32)
    h = jnp.maximum(h + b1_ref[...], 0.0)
    part = jnp.dot(h.astype(w2_ref.dtype), w2_ref[...],
                   preferred_element_type=jnp.float32)

    @pl.when(j == 0)
    def _():
        o_ref[...] = part + b2_ref[...]

    @pl.when(j != 0)
    def _():
        o_ref[...] = o_ref[...] + part


def _mlp_kernel_chunked_acc(x_ref, w1_ref, b1_ref, w2_ref, b2_ref, o_ref, acc_ref):
    # dff chunked; non-f32 output dtype -> separate f32 accumulator scratch.
    j = pl.program_id(1)

    @pl.when(j == 0)
    def _():
        acc_ref[...] = jnp.zeros_like(acc_ref)

    h = jnp.dot(x_ref[...], w1_ref[...], preferred_element_type=jnp.float32)
    h = jnp.maximum(h + b1_ref[...], 0.0)
    acc_ref[...] += jnp.dot(h.astype(w2_ref.dtype), w2_ref[...],
                            preferred_element_type=jnp.float32)

    @pl.when(j == pl.num_programs(1) - 1)
    def _():
        o_ref[...] = (acc_ref[...] + b2_ref[...]).astype(o_ref.dtype)


# ---------------------------------------------------------------------------
# Tiling / footprint logic
# ---------------------------------------------------------------------------
_TM_CANDIDATES = (1024, 768, 512, 384, 256, 128)


def _footprint_bytes(tm, tf, Dp, out_itemsize, chunked):
    wbytes = 2 * 2 * (Dp * tf + tf * Dp)        # bf16 weight chunks, double-buffered
    xbytes = 2 * tm * Dp * 2                    # bf16 x tile, double-buffered
    obytes = 2 * tm * Dp * out_itemsize         # output tile, double-buffered
    bbytes = 2 * 8 * (tf + Dp) * 4              # padded f32 bias rows
    hbytes = tm * tf * 4 + tm * tf * 2          # f32 h intermediate + bf16 cast temp
    accbytes = tm * Dp * 4 if (chunked and out_itemsize != 4) else 0
    return wbytes + xbytes + obytes + bbytes + hbytes + accbytes


def _pick_tiles(M, Dp, Fp, out_itemsize, budget):
    """Choose (tm, tf, chunked) minimizing M-padding waste within the VMEM budget."""
    M128 = _round_up(max(M, 1), 128)
    tms = [t for t in _TM_CANDIDATES if t <= M128] or [128]

    # Path 1: weights fully resident (tf == Fp, no dff chunking).
    fit = [t for t in tms if _footprint_bytes(t, Fp, Dp, out_itemsize, False) <= budget]
    if fit:
        tm = min(fit, key=lambda t: (_round_up(M128, t) - M128, -t))
        return tm, Fp, False

    # Path 2 (fallback for very large d_model*dff): chunk dff. tf must divide Fp
    # and be a multiple of 128 (Fp already is a multiple of 128).
    tf_divs = [d for d in range(Fp, 0, -128) if Fp % d == 0]
    order = sorted(tms, key=lambda t: (_round_up(M128, t) - M128, -t))
    for tm in order:
        for tf in tf_divs:
            if _footprint_bytes(tm, tf, Dp, out_itemsize, True) <= budget:
                return tm, tf, True
    return 128, 128, True   # best effort for extreme shapes


def _maybe_buffered_spec(shape, index_map, deep):
    """Weight-chunk spec with 3-deep pipelining when requested (and supported)."""
    if deep:
        try:
            return pl.BlockSpec(shape, index_map, pipeline_mode=pl.Buffered(3))
        except Exception:
            pass
    return pl.BlockSpec(shape, index_map)


# ---------------------------------------------------------------------------
# Wrapper
# ---------------------------------------------------------------------------
def prepare_mlp_params(w1, b1, w2, b2, compute_dtype=jnp.bfloat16):
    """Pad weights/biases to lane-aligned shapes and cast to the MXU dtype ONCE
    (hoisted out of the per-call path)."""
    D, F = w1.shape
    Dp, Fp = _round_up(D, 128), _round_up(F, 128)

    def pad2(a, rows, cols, dtype):
        a = jnp.asarray(a, dtype)
        if a.shape == (rows, cols):
            return a
        return jnp.pad(a, ((0, rows - a.shape[0]), (0, cols - a.shape[1])))

    return {
        "w1": pad2(w1, Dp, Fp, compute_dtype),
        "b1": pad2(jnp.reshape(b1, (1, -1)), 1, Fp, jnp.float32),
        "w2": pad2(w2, Fp, Dp, compute_dtype),
        "b2": pad2(jnp.reshape(b2, (1, -1)), 1, Dp, jnp.float32),
        "d_model": D,
        "dff": F,
        "compute_dtype": jnp.dtype(compute_dtype),
    }


def mlp_block(x, params):
    """x: (B, S, d_model) -> (B, S, d_model). params from prepare_mlp_params()."""
    B, S, D = x.shape
    assert D == params["d_model"], "d_model mismatch"
    compute_dtype = params["compute_dtype"]
    w1p, b1p, w2p, b2p = params["w1"], params["b1"], params["w2"], params["b2"]
    Dp, Fp = w1p.shape
    M = B * S
    out_dtype = x.dtype
    out_itemsize = jnp.dtype(out_dtype).itemsize

    _, scoped_default, budget = _tpu_config()
    tm, tf, chunked = _pick_tiles(M, Dp, Fp, out_itemsize, budget)

    Mp = _round_up(M, tm)
    n_m = Mp // tm
    n_f = Fp // tf

    # Per-call work on x only: cast to the MXU dtype and zero-pad (exact) if needed.
    x2d = x.reshape(M, D).astype(compute_dtype)
    if (Mp, Dp) != (M, D):
        x2d = jnp.pad(x2d, ((0, Mp - M), (0, Dp - D)))

    est_vmem = _footprint_bytes(tm, tf, Dp, out_itemsize, chunked)
    extra_weight_buf = chunked and (est_vmem + 2 * 2 * Dp * tf <= budget)

    cp_kwargs = dict(
        dimension_semantics=("parallel",) if not chunked else ("parallel", "arbitrary"))
    if est_vmem > scoped_default:
        cp_kwargs["vmem_limit_bytes"] = int(
            min(budget, max(int(1.2 * est_vmem), scoped_default)))
    compiler_params = pltpu.CompilerParams(**cp_kwargs)

    # Advisory cost estimate for XLA scheduling around the custom call.
    flops = 4 * Mp * Dp * Fp
    weight_bytes = 2 * Dp * Fp * jnp.dtype(compute_dtype).itemsize
    bytes_accessed = (Mp * Dp * jnp.dtype(compute_dtype).itemsize
                      + (weight_bytes if not chunked else n_m * weight_bytes)
                      + (Fp + Dp) * 4
                      + Mp * Dp * out_itemsize)
    cost = pl.CostEstimate(flops=int(flops), transcendentals=0,
                           bytes_accessed=int(bytes_accessed))

    if not chunked:
        kernel = _mlp_kernel_resident
        grid = (n_m,)
        in_specs = [
            pl.BlockSpec((tm, Dp), lambda i: (i, 0)),   # x tile (pipelined over i)
            pl.BlockSpec((Dp, Fp), lambda i: (0, 0)),   # w1: DMA'd once, resident
            pl.BlockSpec((1, Fp), lambda i: (0, 0)),    # b1: resident
            pl.BlockSpec((Fp, Dp), lambda i: (0, 0)),   # w2: resident
            pl.BlockSpec((1, Dp), lambda i: (0, 0)),    # b2: resident
        ]
        out_specs = pl.BlockSpec((tm, Dp), lambda i: (i, 0))
        scratch_shapes = []
    else:
        f32_out = jnp.dtype(out_dtype) == jnp.dtype(jnp.float32)
        kernel = _mlp_kernel_chunked_f32 if f32_out else _mlp_kernel_chunked_acc
        grid = (n_m, n_f)
        in_specs = [
            pl.BlockSpec((tm, Dp), lambda i, j: (i, 0)),                       # x tile
            _maybe_buffered_spec((Dp, tf), lambda i, j: (0, j), extra_weight_buf),  # w1 chunk
            pl.BlockSpec((1, tf), lambda i, j: (0, j)),                        # b1 chunk
            _maybe_buffered_spec((tf, Dp), lambda i, j: (j, 0), extra_weight_buf),  # w2 chunk
            pl.BlockSpec((1, Dp), lambda i, j: (0, 0)),                        # b2
        ]
        out_specs = pl.BlockSpec((tm, Dp), lambda i, j: (i, 0))
        scratch_shapes = [] if f32_out else [pltpu.VMEM((tm, Dp), jnp.float32)]

    out = pl.pallas_call(
        kernel,
        out_shape=jax.ShapeDtypeStruct((Mp, Dp), out_dtype),
        grid_spec=pltpu.PrefetchScalarGridSpec(
            num_scalar_prefetch=0,
            grid=grid,
            in_specs=in_specs,
            out_specs=out_specs,
            scratch_shapes=scratch_shapes,
        ),
        compiler_params=compiler_params,
        cost_estimate=cost,
    )(x2d, w1p, b1p, w2p, b2p)

    return out[:M, :D].reshape(B, S, D)


# ---------------------------------------------------------------------------
# Parameter init (deterministic, xavier-uniform-ish like the PyTorch Linear init)
# ---------------------------------------------------------------------------
def init_params(key, d_model, dim_feedforward):
    k1, k2 = jax.random.split(key)
    lim1 = (6.0 / (d_model + dim_feedforward)) ** 0.5
    w1 = jax.random.uniform(k1, (d_model, dim_feedforward), jnp.float32, -lim1, lim1)
    b1 = jnp.zeros((dim_feedforward,), jnp.float32)
    lim2 = (6.0 / (dim_feedforward + d_model)) ** 0.5
    w2 = jax.random.uniform(k2, (dim_feedforward, d_model), jnp.float32, -lim2, lim2)
    b2 = jnp.zeros((d_model,), jnp.float32)
    return w1, b1, w2, b2


if __name__ == "__main__":
    d_model = 64
    dim_feedforward = 256
    batch, seq = 2, 8

    key = jax.random.PRNGKey(0)
    kx, kp = jax.random.split(key)
    x = jax.random.normal(kx, (batch, seq, d_model), jnp.float32)
    w1, b1, w2, b2 = init_params(kp, d_model, dim_feedforward)

    # Pad + cast weights once (hoisted out of the per-call path).
    params = prepare_mlp_params(w1, b1, w2, b2)

    y = mlp_block(x, params)
    jax.block_until_ready(y)

    # Reference in plain JAX (same semantics as the PyTorch module; dropout p=0.0
    # is the identity). Tolerance accounts for bf16 MXU operands (f32 accumulation).
    h_ref = jnp.maximum(x @ w1 + b1, 0.0)
    y_ref = h_ref @ w2 + b2
    assert y.shape == (batch, seq, d_model)
    max_err = float(jnp.max(jnp.abs(y - y_ref)))
    assert jnp.allclose(y, y_ref, atol=5e-2, rtol=5e-2), max_err

    print("KERNEL_OK")
</pallas_src>

<mosaic_0001>
module attributes {stable_mosaic.version = 11 : i64} {
  func.func @_mlp_kernel_resident(%arg0: i32, %arg1: memref<128x128xbf16, #tpu.memory_space<vmem>>, %arg2: memref<128x256xbf16, #tpu.memory_space<vmem>>, %arg3: memref<1x256xf32, #tpu.memory_space<vmem>>, %arg4: memref<256x128xbf16, #tpu.memory_space<vmem>>, %arg5: memref<1x128xf32, #tpu.memory_space<vmem>>, %arg6: memref<128x128xf32, #tpu.memory_space<vmem>>) attributes {dimension_semantics = [#tpu.dimension_semantics<parallel>], iteration_bounds = array<i64: 1>, scalar_prefetch = 0 : i64, scratch_operands = 0 : i64, tpu.core_type = #tpu.core_type<tc>, window_params = [{transform_indices = @transform_0, window_bounds = array<i64: 128, 128>}, {pipeline_mode = #tpu.pipeline_mode<synchronous>, transform_indices = @transform_1, window_bounds = array<i64: 128, 256>}, {pipeline_mode = #tpu.pipeline_mode<synchronous>, transform_indices = @transform_2, window_bounds = array<i64: 1, 256>}, {pipeline_mode = #tpu.pipeline_mode<synchronous>, transform_indices = @transform_3, window_bounds = array<i64: 256, 128>}, {pipeline_mode = #tpu.pipeline_mode<synchronous>, transform_indices = @transform_4, window_bounds = array<i64: 1, 128>}, {transform_indices = @transform_5, window_bounds = array<i64: 128, 128>}]} {
    %c0 = arith.constant 0 : index
    %c0_0 = arith.constant 0 : index
    %0 = vector.load %arg1[%c0, %c0_0] : memref<128x128xbf16, #tpu.memory_space<vmem>>, vector<128x128xbf16>
    %c0_1 = arith.constant 0 : index
    %c0_2 = arith.constant 0 : index
    %1 = vector.load %arg2[%c0_1, %c0_2] : memref<128x256xbf16, #tpu.memory_space<vmem>>, vector<128x256xbf16>
    %cst = arith.constant dense<0.000000e+00> : vector<128x256xf32>
    %2 = tpu.matmul %0, %1, %cst {dimension_numbers = #tpu.dot_dimension_numbers<[1], [0], [0], [1], [0, 0, 1, 1], [], []>} : vector<128x128xbf16>, vector<128x256xbf16>, vector<128x256xf32> -> vector<128x256xf32>
    %c0_3 = arith.constant 0 : index
    %c0_4 = arith.constant 0 : index
    %3 = vector.load %arg3[%c0_3, %c0_4] : memref<1x256xf32, #tpu.memory_space<vmem>>, vector<1x256xf32>
    %4 = vector.broadcast %3 : vector<1x256xf32> to vector<128x256xf32>
    %5 = arith.addf %2, %4 : vector<128x256xf32>
    %cst_5 = arith.constant 0.000000e+00 : f32
    %6 = vector.broadcast %cst_5 : f32 to vector<128x256xf32>
    %7 = arith.maximumf %5, %6 : vector<128x256xf32>
    %8 = arith.truncf %7 : vector<128x256xf32> to vector<128x256xbf16>
    %c0_6 = arith.constant 0 : index
    %c0_7 = arith.constant 0 : index
    %9 = vector.load %arg4[%c0_6, %c0_7] : memref<256x128xbf16, #tpu.memory_space<vmem>>, vector<256x128xbf16>
    %cst_8 = arith.constant dense<0.000000e+00> : vector<128x128xf32>
    %10 = tpu.matmul %8, %9, %cst_8 {dimension_numbers = #tpu.dot_dimension_numbers<[1], [0], [0], [1], [0, 0, 1, 1], [], []>} : vector<128x256xbf16>, vector<256x128xbf16>, vector<128x128xf32> -> vector<128x128xf32>
    %c0_9 = arith.constant 0 : index
    %c0_10 = arith.constant 0 : index
    %11 = vector.load %arg5[%c0_9, %c0_10] : memref<1x128xf32, #tpu.memory_space<vmem>>, vector<1x128xf32>
    %12 = vector.broadcast %11 : vector<1x128xf32> to vector<128x128xf32>
    %13 = arith.addf %10, %12 : vector<128x128xf32>
    %c0_11 = arith.constant 0 : index
    %c0_12 = arith.constant 0 : index
    %14 = vector.load %arg6[%c0_11, %c0_12] : memref<128x128xf32, #tpu.memory_space<vmem>>, vector<128x128xf32>
    tpu.vector_store %arg6[%c0_11, %c0_12], %13 {strides = array<i32>} : memref<128x128xf32, #tpu.memory_space<vmem>>, vector<128x128xf32>,
    return
  }
  func.func @transform_0(%arg0: i32) -> (i32, i32) {
    %c0_i32 = arith.constant 0 : i32
    %c0_i32_0 = arith.constant 0 : i32
    return %arg0, %c0_i32 : i32, i32
  }
  func.func @transform_1(%arg0: i32) -> (i32, i32) {
    %c0_i32 = arith.constant 0 : i32
    %c0_i32_0 = arith.constant 0 : i32
    %c0_i32_1 = arith.constant 0 : i32
    return %c0_i32, %c0_i32_0 : i32, i32
  }
  func.func @transform_2(%arg0: i32) -> (i32, i32) {
    %c0_i32 = arith.constant 0 : i32
    %c0_i32_0 = arith.constant 0 : i32
    %c0_i32_1 = arith.constant 0 : i32
    return %c0_i32, %c0_i32_0 : i32, i32
  }
  func.func @transform_3(%arg0: i32) -> (i32, i32) {
    %c0_i32 = arith.constant 0 : i32
    %c0_i32_0 = arith.constant 0 : i32
    %c0_i32_1 = arith.constant 0 : i32
    return %c0_i32, %c0_i32_0 : i32, i32
  }
  func.func @transform_4(%arg0: i32) -> (i32, i32) {
    %c0_i32 = arith.constant 0 : i32
    %c0_i32_0 = arith.constant 0 : i32
    %c0_i32_1 = arith.constant 0 : i32
    return %c0_i32, %c0_i32_0 : i32, i32
  }
  func.func @transform_5(%arg0: i32) -> (i32, i32) {
    %c0_i32 = arith.constant 0 : i32
    %c0_i32_0 = arith.constant 0 : i32
    return %arg0, %c0_i32 : i32, i32
  }
}

</mosaic_0001>

<llo_original>
// kernel: tpu_custom_call.1
$region0: #{tpu_custom_call.1}
  #allocation0 [shape = 'u32[]', space=smem, size = 0x4, offset = 0x4, fixed_abs, tag = 'smem constant byte address 0x4 - core index']
  #allocation1 [shape = 'u32[144,128]{1,0:T(1,128)}', space=vmem, size = 0x12000, scoped, tag = 'internal scratch']
  %s0 = inlined_call_operand.hbm [shape: bf16[128,128], index: 0, kind: input, shape index: {}]
  %s1 = inlined_call_operand.hbm [shape: bf16[128,256], index: 1, kind: input, shape index: {}]
  %s2 = inlined_call_operand.vmem [shape: f32[1,256], index: 2, kind: input, shape index: {}]
  %s3 = inlined_call_operand.hbm [shape: bf16[256,128], index: 3, kind: input, shape index: {}]
  %s4 = inlined_call_operand.vmem [shape: f32[1,128], index: 4, kind: input, shape index: {}]
  %s5 = inlined_call_operand.hbm [shape: f32[128,128], index: 5, kind: output, shape index: {}]
  %s6 = sld [smem:[#allocation0]]
  $region42: #{tpu_custom_call.1} parent=0
    _
  %s8 = ssub.s32 1, %s6
  %s9 = scalar_select 0, %s8, %s6
  $region1: #{tpu_custom_call.1} parent=0
    #allocation2 [shape = 'u8[32768]{0}', space=vmem, size = 0x8000, scoped, tag = 'input window, operand 0, single buffered']
    #allocation3 [shape = 's32[1]{0}', space=sflag, size = 0x4, scoped, tag = 'scoped memory for tpu_custom_call.1']
    #allocation4 [shape = 's32[1]{0}', space=sflag, size = 0x4, scoped, tag = 'scoped memory for tpu_custom_call.1']
    #allocation5 [shape = 'u8[65536]{0}', space=vmem, size = 0x10000, scoped, tag = 'input window, operand 1, single buffered']
    #allocation6 [shape = 's32[1]{0}', space=sflag, size = 0x4, scoped, tag = 'scoped memory for tpu_custom_call.1']
    #allocation7 [shape = 'u8[65536]{0}', space=vmem, size = 0x10000, scoped, tag = 'input window, operand 3, single buffered']
    #allocation8 [shape = 'u8[65536]{0}', space=vmem, size = 0x10000, scoped, tag = 'output window, operand 0, single buffered']
    %10 = vsyncpa [#allocation3], 0
    %11 = vsyncpa [#allocation6], 0
    %12 = vsyncpa [#allocation4], 0
    // Predicated region
    $region2: #{tpu_custom_call.1} parent=1 // pred_check
      _
    $region3: #{tpu_custom_call.1} parent=1 // pred_check_branch
      %14 = sbr.rel (0) target = $region5
    $region4: #{tpu_custom_call.1} parent=1 // pred_region
      %s16 = ssub.s32 1024, 1024
      %17 = vsyncadd [#allocation3], %s16
      %s18 = sshll.u32 [#allocation2], 4
      %s19 = int_to_ptr.vmem [resolvable:$true] %s18
      %24 = dma.hbm_to_vmem [thread:$0]  %s0, 1024, %s19, [#allocation3], 64, 64, 4
    $region5: #{tpu_custom_call.1} parent=1 // pred_fallthru
      _
    // Predicated region
    $region6: #{tpu_custom_call.1} parent=1 // pred_check
      _
    $region7: #{tpu_custom_call.1} parent=1 // pred_check_branch
      %26 = sbr.rel (0) target = $region9
    $region8: #{tpu_custom_call.1} parent=1 // pred_region
      %s28 = ssub.s32 2048, 2048
      %29 = vsyncadd [#allocation6], %s28
      %s30 = sshll.u32 [#allocation5], 4
      %s31 = int_to_ptr.vmem [resolvable:$true] %s30
      %36 = dma.hbm_to_vmem [thread:$0]  %s1, 2048, %s31, [#allocation6], 128, 128, 8
    $region9: #{tpu_custom_call.1} parent=1 // pred_fallthru
      _
    // Predicated region
    $region10: #{tpu_custom_call.1} parent=1 // pred_check
      _
    $region11: #{tpu_custom_call.1} parent=1 // pred_check_branch
      %38 = sbr.rel (0) target = $region13
    $region12: #{tpu_custom_call.1} parent=1 // pred_region
      _
    $region13: #{tpu_custom_call.1} parent=1 // pred_fallthru
      _
    // Predicated region
    $region14: #{tpu_custom_call.1} parent=1 // pred_check
      _
    $region15: #{tpu_custom_call.1} parent=1 // pred_check_branch
      %40 = sbr.rel (0) target = $region17
    $region16: #{tpu_custom_call.1} parent=1 // pred_region
      %s42 = ssub.s32 2048, 2048
      %43 = vsyncadd [#allocation6], %s42
      %s44 = sshll.u32 [#allocation7], 4
      %s45 = int_to_ptr.vmem [resolvable:$true] %s44
      %50 = dma.hbm_to_vmem [thread:$0]  %s3, 2048, %s45, [#allocation6], 64, 64, 4
    $region17: #{tpu_custom_call.1} parent=1 // pred_fallthru
      _
    // Predicated region
    $region18: #{tpu_custom_call.1} parent=1 // pred_check
      _
    $region19: #{tpu_custom_call.1} parent=1 // pred_check_branch
      %52 = sbr.rel (0) target = $region21
    $region20: #{tpu_custom_call.1} parent=1 // pred_region
      _
    $region21: #{tpu_custom_call.1} parent=1 // pred_fallthru
      _
    // Predicated region
    $region22: #{tpu_custom_call.1} parent=1 // pred_check
      _
    $region23: #{tpu_custom_call.1} parent=1 // pred_check_branch
      %54 = sbr.rel (0) target = $region25
    $region24: #{tpu_custom_call.1} parent=1 // pred_region
      %55 = dma.done [#allocation3], 1024
    $region25: #{tpu_custom_call.1} parent=1 // pred_fallthru
      _
    // Predicated region
    $region26: #{tpu_custom_call.1} parent=1 // pred_check
      _
    $region27: #{tpu_custom_call.1} parent=1 // pred_check_branch
      %57 = sbr.rel (0) target = $region29
    $region28: #{tpu_custom_call.1} parent=1 // pred_region
      %58 = dma.done [#allocation6], 2048
    $region29: #{tpu_custom_call.1} parent=1 // pred_fallthru
      _
    // Predicated region
    $region30: #{tpu_custom_call.1} parent=1 // pred_check
      _
    $region31: #{tpu_custom_call.1} parent=1 // pred_check_branch
      %60 = sbr.rel (0) target = $region33
    $region32: #{tpu_custom_call.1} parent=1 // pred_region
      %61 = dma.done [#allocation6], 2048
    $region33: #{tpu_custom_call.1} parent=1 // pred_fallthru
      _
    %v63 = vld [vmem:[#allocation2] sm:$0xf]
    %v64 = vld [vmem:[#allocation2 + $0x4] sm:$0xf]
    %v65 = vld [vmem:[#allocation2 + $0x8] sm:$0xf]
    %v66 = vld [vmem:[#allocation2 + $0xc] sm:$0xf]
    %v67 = vld [vmem:[#allocation2 + $0x10] sm:$0xf]
    %v68 = vld [vmem:[#allocation2 + $0x14] sm:$0xf]
    %v69 = vld [vmem:[#allocation2 + $0x18] sm:$0xf]
    %v70 = vld [vmem:[#allocation2 + $0x1c] sm:$0xf]
    %v71 = vld [vmem:[#allocation2 + $0x20] sm:$0xf]
    %v72 = vld [vmem:[#allocation2 + $0x24] sm:$0xf]
    %v73 = vld [vmem:[#allocation2 + $0x28] sm:$0xf]
    %v74 = vld [vmem:[#allocation2 + $0x2c] sm:$0xf]
    %v75 = vld [vmem:[#allocation2 + $0x30] sm:$0xf]
    %v76 = vld [vmem:[#allocation2 + $0x34] sm:$0xf]
    %v77 = vld [vmem:[#allocation2 + $0x38] sm:$0xf]
    %v78 = vld [vmem:[#allocation2 + $0x3c] sm:$0xf]
    %v79 = vld [vmem:[#allocation5] sm:$0xff]
    %v80 = vld [vmem:[#allocation5 + $0x8] sm:$0xff]
    %v81 = vld [vmem:[#allocation5 + $0x10] sm:$0xff]
    %v82 = vld [vmem:[#allocation5 + $0x18] sm:$0xff]
    %v83 = vld [vmem:[#allocation5 + $0x20] sm:$0xff]
    %v84 = vld [vmem:[#allocation5 + $0x28] sm:$0xff]
    %v85 = vld [vmem:[#allocation5 + $0x30] sm:$0xff]
    %v86 = vld [vmem:[#allocation5 + $0x38] sm:$0xff]
    %v87 = vld [vmem:[#allocation5 + $0x40] sm:$0xff]
    %v88 = vld [vmem:[#allocation5 + $0x48] sm:$0xff]
    %v89 = vld [vmem:[#allocation5 + $0x50] sm:$0xff]
    %v90 = vld [vmem:[#allocation5 + $0x58] sm:$0xff]
    %v91 = vld [vmem:[#allocation5 + $0x60] sm:$0xff]
    %v92 = vld [vmem:[#allocation5 + $0x68] sm:$0xff]
    %v93 = vld [vmem:[#allocation5 + $0x70] sm:$0xff]
    %v94 = vld [vmem:[#allocation5 + $0x78] sm:$0xff]
    %v95 = vld [vmem:[%s2] sm:$0x3]
    %v97 = vlaneseq
    %v98 = vshrl.u32 %v97, 7
    %v99 = vsub.s32 0, %v98
    %v100 = vrot.slane %v95, %v99
    %v101 = vlaneseq
    %v102 = vshrl.u32 %v101, 7
    %v103 = vsub.s32 1, %v102
    %v104 = vrot.slane %v95, %v103
    %v123 = vunpack.c.l.b16 %v63
    %v124 = vunpack.c.l.b16 %v64
    %v125 = vunpack.c.l.b16 %v65
    %v126 = vunpack.c.l.b16 %v66
    %v127 = vunpack.c.l.b16 %v67
    %v128 = vunpack.c.l.b16 %v68
    %v129 = vunpack.c.l.b16 %v69
    %v130 = vunpack.c.l.b16 %v70
    %v131 = vunpack.c.l.b16 %v71
    %v132 = vunpack.c.l.b16 %v72
    %v133 = vunpack.c.l.b16 %v73
    %v134 = vunpack.c.l.b16 %v74
    %v135 = vunpack.c.l.b16 %v75
    %v136 = vunpack.c.l.b16 %v76
    %v137 = vunpack.c.l.b16 %v77
    %v138 = vunpack.c.l.b16 %v78
    %v139 = vpack.c.b16 %v124, %v123
    %v140 = vpack.c.b16 %v126, %v125
    %v141 = vpack.c.b16 %v128, %v127
    %v142 = vpack.c.b16 %v130, %v129
    %v143 = vpack.c.b16 %v132, %v131
    %v144 = vpack.c.b16 %v134, %v133
    %v145 = vpack.c.b16 %v136, %v135
    %v146 = vpack.c.b16 %v138, %v137
    %v171 = vunpack.c.l.b16 %v79
    %v172 = vunpack.c.h.b16 %v79
    %v173 = vunpack.c.l.b16 %v80
    %v174 = vunpack.c.h.b16 %v80
    %v175 = vunpack.c.l.b16 %v81
    %v176 = vunpack.c.h.b16 %v81
    %v177 = vunpack.c.l.b16 %v82
    %v178 = vunpack.c.h.b16 %v82
    %v179 = vunpack.c.l.b16 %v83
    %v180 = vunpack.c.h.b16 %v83
    %v181 = vunpack.c.l.b16 %v84
    %v182 = vunpack.c.h.b16 %v84
    %v183 = vunpack.c.l.b16 %v85
    %v184 = vunpack.c.h.b16 %v85
    %v185 = vunpack.c.l.b16 %v86
    %v186 = vunpack.c.h.b16 %v86
    %v187 = vunpack.c.l.b16 %v87
    %v188 = vunpack.c.h.b16 %v87
    %v189 = vunpack.c.l.b16 %v88
    %v190 = vunpack.c.h.b16 %v88
    %v191 = vunpack.c.l.b16 %v89
    %v192 = vunpack.c.h.b16 %v89
    %v193 = vunpack.c.l.b16 %v90
    %v194 = vunpack.c.h.b16 %v90
    %v195 = vunpack.c.l.b16 %v91
    %v196 = vunpack.c.h.b16 %v91
    %v197 = vunpack.c.l.b16 %v92
    %v198 = vunpack.c.h.b16 %v92
    %v199 = vunpack.c.l.b16 %v93
    %v200 = vunpack.c.h.b16 %v93
    %v201 = vunpack.c.l.b16 %v94
    %v202 = vunpack.c.h.b16 %v94
    %v203 = vpack.c.b16 %v173, %v171
    %v204 = vpack.c.b16 %v174, %v172
    %v205 = vpack.c.b16 %v177, %v175
    %v206 = vpack.c.b16 %v178, %v176
    %v207 = vpack.c.b16 %v181, %v179
    %v208 = vpack.c.b16 %v182, %v180
    %v209 = vpack.c.b16 %v185, %v183
    %v210 = vpack.c.b16 %v186, %v184
    %v211 = vpack.c.b16 %v189, %v187
    %v212 = vpack.c.b16 %v190, %v188
    %v213 = vpack.c.b16 %v193, %v191
    %v214 = vpack.c.b16 %v194, %v192
    %v215 = vpack.c.b16 %v197, %v195
    %v216 = vpack.c.b16 %v198, %v196
    %v217 = vpack.c.b16 %v201, %v199
    %v218 = vpack.c.b16 %v202, %v200
    %235 = vmatprep.subr.bf16.mxu0 %v204
    %236 = vmatpush1.bf16.msra.mxu0 %v203
    %237 = vmatprep.subr.bf16.mxu0 %v206
    %238 = vmatpush1.bf16.msra.mxu0 %v205
    %239 = vmatprep.subr.bf16.mxu0 %v208
    %240 = vmatpush1.bf16.msra.mxu0 %v207
    %241 = vmatprep.subr.bf16.mxu0 %v210
    %242 = vmatpush1.bf16.msra.mxu0 %v209
    %243 = vmatprep.subr.bf16.mxu0 %v212
    %244 = vmatpush1.bf16.msra.mxu0 %v211
    %245 = vmatprep.subr.bf16.mxu0 %v214
    %246 = vmatpush1.bf16.msra.mxu0 %v213
    %247 = vmatprep.subr.bf16.mxu0 %v216
    %248 = vmatpush1.bf16.msra.mxu0 %v215
    %249 = vmatprep.subr.bf16.mxu0 %v218
    %250 = vmatpush1.bf16.msra.mxu0 %v217
    %251 = vmatprep.subr.bf16.mxu0 0
    %252 = vmatpush1.bf16.msra.mxu0 0
    %253 = vmatprep.subr.bf16.mxu0 0
    %254 = vmatpush1.bf16.msra.mxu0 0
    %255 = vmatprep.subr.bf16.mxu0 0
    %256 = vmatpush1.bf16.msra.mxu0 0
    %257 = vmatprep.subr.bf16.mxu0 0
    %258 = vmatpush1.bf16.msra.mxu0 0
    %259 = vmatprep.subr.bf16.mxu0 0
    %260 = vmatpush1.bf16.msra.mxu0 0
    %261 = vmatprep.subr.bf16.mxu0 0
    %262 = vmatpush1.bf16.msra.mxu0 0
    %263 = vmatprep.subr.bf16.mxu0 0
    %264 = vmatpush1.bf16.msra.mxu0 0
    %265 = vmatprep.subr.bf16.mxu0 0
    %266 = vmatpush1.bf16.msra.mxu0 0
    %267 = vmatprep.mubr.bf16.mxu0 0
    %268 = vmatmul.mubr.bf16.gmra.mrb[0].mxu0 %v139
    %v269 = vpop.f32.mrb[0].mxu0
    %v270 = vadd.f32 %v100, %v269
    %v271 = vpop.f32.mrb[0].mxu0
    %v272 = vadd.f32 %v104, %v271
    %v273 = vpop.f32.mrb[0].mxu0
    %v274 = vadd.f32 %v100, %v273
    %v275 = vpop.f32.mrb[0].mxu0
    %v276 = vadd.f32 %v104, %v275
    %277 = vmatprep.mubr.bf16.mxu0 0
    %278 = vmatmul.mubr.bf16.gmra.mrb[0].mxu0 %v140
    %v279 = vpop.f32.mrb[0].mxu0
    %v280 = vadd.f32 %v100, %v279
    %v281 = vpop.f32.mrb[0].mxu0
    %v282 = vadd.f32 %v104, %v281
    %v283 = vpop.f32.mrb[0].mxu0
    %v284 = vadd.f32 %v100, %v283
    %v285 = vpop.f32.mrb[0].mxu0
    %v286 = vadd.f32 %v104, %v285
    %287 = vmatprep.mubr.bf16.mxu0 0
    %288 = vmatmul.mubr.bf16.gmra.mrb[0].mxu0 %v141
    %v289 = vpop.f32.mrb[0].mxu0
    %v290 = vadd.f32 %v100, %v289
    %v291 = vpop.f32.mrb[0].mxu0
    %v292 = vadd.f32 %v104, %v291
    %v293 = vpop.f32.mrb[0].mxu0
    %v294 = vadd.f32 %v100, %v293
    %v295 = vpop.f32.mrb[0].mxu0
    %v296 = vadd.f32 %v104, %v295
    %297 = vmatprep.mubr.bf16.mxu0 0
    %298 = vmatmul.mubr.bf16.gmra.mrb[0].mxu0 %v142
    %v299 = vpop.f32.mrb[0].mxu0
    %v300 = vadd.f32 %v100, %v299
    %v301 = vpop.f32.mrb[0].mxu0
    %v302 = vadd.f32 %v104, %v301
    %v303 = vpop.f32.mrb[0].mxu0
    %v304 = vadd.f32 %v100, %v303
    %v305 = vpop.f32.mrb[0].mxu0
    %v306 = vadd.f32 %v104, %v305
    %307 = vmatprep.mubr.bf16.mxu0 0
    %308 = vmatmul.mubr.bf16.gmra.mrb[0].mxu0 %v143
    %v309 = vpop.f32.mrb[0].mxu0
    %v310 = vadd.f32 %v100, %v309
    %v311 = vpop.f32.mrb[0].mxu0
    %v312 = vadd.f32 %v104, %v311
    %v313 = vpop.f32.mrb[0].mxu0
    %v314 = vadd.f32 %v100, %v313
    %v315 = vpop.f32.mrb[0].mxu0
    %v316 = vadd.f32 %v104, %v315
    %317 = vmatprep.mubr.bf16.mxu0 0
    %318 = vmatmul.mubr.bf16.gmra.mrb[0].mxu0 %v144
    %v319 = vpop.f32.mrb[0].mxu0
    %v320 = vadd.f32 %v100, %v319
    %v321 = vpop.f32.mrb[0].mxu0
    %v322 = vadd.f32 %v104, %v321
    %v323 = vpop.f32.mrb[0].mxu0
    %v324 = vadd.f32 %v100, %v323
    %v325 = vpop.f32.mrb[0].mxu0
    %v326 = vadd.f32 %v104, %v325
    %327 = vmatprep.mubr.bf16.mxu0 0
    %328 = vmatmul.mubr.bf16.gmra.mrb[0].mxu0 %v145
    %v329 = vpop.f32.mrb[0].mxu0
    %v330 = vadd.f32 %v100, %v329
    %v331 = vpop.f32.mrb[0].mxu0
    %v332 = vadd.f32 %v104, %v331
    %v333 = vpop.f32.mrb[0].mxu0
    %v334 = vadd.f32 %v100, %v333
    %v335 = vpop.f32.mrb[0].mxu0
    %v336 = vadd.f32 %v104, %v335
    %337 = vmatprep.mubr.bf16.mxu0 0
    %338 = vmatmul.mubr.bf16.gmra.mrb[0].mxu0 %v146
    %v339 = vpop.f32.mrb[0].mxu0
    %v340 = vadd.f32 %v100, %v339
    %v341 = vpop.f32.mrb[0].mxu0
    %v342 = vadd.f32 %v104, %v341
    %v343 = vpop.f32.mrb[0].mxu0
    %v344 = vadd.f32 %v100, %v343
    %v345 = vpop.f32.mrb[0].mxu0
    %v346 = vadd.f32 %v104, %v345
    %347 = vdwg.mxu0
    %v348 = vmax.f32 %v270, 0.0
    %v349 = vmax.f32 %v272, 0.0
    %v350 = vmax.f32 %v274, 0.0
    %v351 = vmax.f32 %v276, 0.0
    %v352 = vmax.f32 %v280, 0.0
    %v353 = vmax.f32 %v282, 0.0
    %v354 = vmax.f32 %v284, 0.0
    %v355 = vmax.f32 %v286, 0.0
    %v356 = vmax.f32 %v290, 0.0
    %v357 = vmax.f32 %v292, 0.0
    %v358 = vmax.f32 %v294, 0.0
    %v359 = vmax.f32 %v296, 0.0
    %v360 = vmax.f32 %v300, 0.0
    %v361 = vmax.f32 %v302, 0.0
    %v362 = vmax.f32 %v304, 0.0
    %v363 = vmax.f32 %v306, 0.0
    %v364 = vmax.f32 %v310, 0.0
    %v365 = vmax.f32 %v312, 0.0
    %v366 = vmax.f32 %v314, 0.0
    %v367 = vmax.f32 %v316, 0.0
    %v368 = vmax.f32 %v320, 0.0
    %v369 = vmax.f32 %v322, 0.0
    %v370 = vmax.f32 %v324, 0.0
    %v371 = vmax.f32 %v326, 0.0
    %v372 = vmax.f32 %v330, 0.0
    %v373 = vmax.f32 %v332, 0.0
    %v374 = vmax.f32 %v334, 0.0
    %v375 = vmax.f32 %v336, 0.0
    %v376 = vmax.f32 %v340, 0.0
    %v377 = vmax.f32 %v342, 0.0
    %v378 = vmax.f32 %v344, 0.0
    %v379 = vmax.f32 %v346, 0.0
    %v380 = vpack.c.bf16 %v350, %v348
    %v381 = vpack.c.bf16 %v351, %v349
    %v382 = vpack.c.bf16 %v354, %v352
    %v383 = vpack.c.bf16 %v355, %v353
    %v384 = vpack.c.bf16 %v358, %v356
    %v385 = vpack.c.bf16 %v359, %v357
    %v386 = vpack.c.bf16 %v362, %v360
    %v387 = vpack.c.bf16 %v363, %v361
    %v388 = vpack.c.bf16 %v366, %v364
    %v389 = vpack.c.bf16 %v367, %v365
    %v390 = vpack.c.bf16 %v370, %v368
    %v391 = vpack.c.bf16 %v371, %v369
    %v392 = vpack.c.bf16 %v374, %v372
    %v393 = vpack.c.bf16 %v375, %v373
    %v394 = vpack.c.bf16 %v378, %v376
    %v395 = vpack.c.bf16 %v379, %v377
    %v396 = vld [vmem:[#allocation7] sm:$0xf]
    %v397 = vld [vmem:[#allocation7 + $0x4] sm:$0xf]
    %v398 = vld [vmem:[#allocation7 + $0x8] sm:$0xf]
    %v399 = vld [vmem:[#allocation7 + $0xc] sm:$0xf]
    %v400 = vld [vmem:[#allocation7 + $0x10] sm:$0xf]
    %v401 = vld [vmem:[#allocation7 + $0x14] sm:$0xf]
    %v402 = vld [vmem:[#allocation7 + $0x18] sm:$0xf]
    %v403 = vld [vmem:[#allocation7 + $0x1c] sm:$0xf]
    %v404 = vld [vmem:[#allocation7 + $0x20] sm:$0xf]
    %v405 = vld [vmem:[#allocation7 + $0x24] sm:$0xf]
    %v406 = vld [vmem:[#allocation7 + $0x28] sm:$0xf]
    %v407 = vld [vmem:[#allocation7 + $0x2c] sm:$0xf]
    %v408 = vld [vmem:[#allocation7 + $0x30] sm:$0xf]
    %v409 = vld [vmem:[#allocation7 + $0x34] sm:$0xf]
    %v410 = vld [vmem:[#allocation7 + $0x38] sm:$0xf]
    %v411 = vld [vmem:[#allocation7 + $0x3c] sm:$0xf]
    %v412 = vld [vmem:[#allocation7 + $0x40] sm:$0xf]
    %v413 = vld [vmem:[#allocation7 + $0x44] sm:$0xf]
    %v414 = vld [vmem:[#allocation7 + $0x48] sm:$0xf]
    %v415 = vld [vmem:[#allocation7 + $0x4c] sm:$0xf]
    %v416 = vld [vmem:[#allocation7 + $0x50] sm:$0xf]
    %v417 = vld [vmem:[#allocation7 + $0x54] sm:$0xf]
    %v418 = vld [vmem:[#allocation7 + $0x58] sm:$0xf]
    %v419 = vld [vmem:[#allocation7 + $0x5c] sm:$0xf]
    %v420 = vld [vmem:[#allocation7 + $0x60] sm:$0xf]
    %v421 = vld [vmem:[#allocation7 + $0x64] sm:$0xf]
    %v422 = vld [vmem:[#allocation7 + $0x68] sm:$0xf]
    %v423 = vld [vmem:[#allocation7 + $0x6c] sm:$0xf]
    %v424 = vld [vmem:[#allocation7 + $0x70] sm:$0xf]
    %v425 = vld [vmem:[#allocation7 + $0x74] sm:$0xf]
    %v426 = vld [vmem:[#allocation7 + $0x78] sm:$0xf]
    %v427 = vld [vmem:[#allocation7 + $0x7c] sm:$0xf]
    %v428 = vld [vmem:[%s4] sm:$0x1]
    %v430 = vlaneseq
    %v431 = vshrl.u32 %v430, 7
    %v432 = vsub.s32 0, %v431
    %v433 = vrot.slane %v428, %v432
    %v467 = vunpack.c.l.b16 %v396
    %v468 = vunpack.c.l.b16 %v397
    %v469 = vunpack.c.l.b16 %v398
    %v470 = vunpack.c.l.b16 %v399
    %v471 = vunpack.c.l.b16 %v400
    %v472 = vunpack.c.l.b16 %v401
    %v473 = vunpack.c.l.b16 %v402
    %v474 = vunpack.c.l.b16 %v403
    %v475 = vunpack.c.l.b16 %v404
    %v476 = vunpack.c.l.b16 %v405
    %v477 = vunpack.c.l.b16 %v406
    %v478 = vunpack.c.l.b16 %v407
    %v479 = vunpack.c.l.b16 %v408
    %v480 = vunpack.c.l.b16 %v409
    %v481 = vunpack.c.l.b16 %v410
    %v482 = vunpack.c.l.b16 %v411
    %v483 = vunpack.c.l.b16 %v412
    %v484 = vunpack.c.l.b16 %v413
    %v485 = vunpack.c.l.b16 %v414
    %v486 = vunpack.c.l.b16 %v415
    %v487 = vunpack.c.l.b16 %v416
    %v488 = vunpack.c.l.b16 %v417
    %v489 = vunpack.c.l.b16 %v418
    %v490 = vunpack.c.l.b16 %v419
    %v491 = vunpack.c.l.b16 %v420
    %v492 = vunpack.c.l.b16 %v421
    %v493 = vunpack.c.l.b16 %v422
    %v494 = vunpack.c.l.b16 %v423
    %v495 = vunpack.c.l.b16 %v424
    %v496 = vunpack.c.l.b16 %v425
    %v497 = vunpack.c.l.b16 %v426
    %v498 = vunpack.c.l.b16 %v427
    %v499 = vpack.c.b16 %v468, %v467
    %v500 = vpack.c.b16 %v470, %v469
    %v501 = vpack.c.b16 %v472, %v471
    %v502 = vpack.c.b16 %v474, %v473
    %v503 = vpack.c.b16 %v476, %v475
    %v504 = vpack.c.b16 %v478, %v477
    %v505 = vpack.c.b16 %v480, %v479
    %v506 = vpack.c.b16 %v482, %v481
    %v507 = vpack.c.b16 %v484, %v483
    %v508 = vpack.c.b16 %v486, %v485
    %v509 = vpack.c.b16 %v488, %v487
    %v510 = vpack.c.b16 %v490, %v489
    %v511 = vpack.c.b16 %v492, %v491
    %v512 = vpack.c.b16 %v494, %v493
    %v513 = vpack.c.b16 %v496, %v495
    %v514 = vpack.c.b16 %v498, %v497
    %531 = vmatprep.subr.bf16.mxu0 0
    %532 = vmatpush1.bf16.msra.mxu0 %v499
    %533 = vmatprep.subr.bf16.mxu0 0
    %534 = vmatpush1.bf16.msra.mxu0 %v500
    %535 = vmatprep.subr.bf16.mxu0 0
    %536 = vmatpush1.bf16.msra.mxu0 %v501
    %537 = vmatprep.subr.bf16.mxu0 0
    %538 = vmatpush1.bf16.msra.mxu0 %v502
    %539 = vmatprep.subr.bf16.mxu0 0
    %540 = vmatpush1.bf16.msra.mxu0 %v503
    %541 = vmatprep.subr.bf16.mxu0 0
    %542 = vmatpush1.bf16.msra.mxu0 %v504
    %543 = vmatprep.subr.bf16.mxu0 0
    %544 = vmatpush1.bf16.msra.mxu0 %v505
    %545 = vmatprep.subr.bf16.mxu0 0
    %546 = vmatpush1.bf16.msra.mxu0 %v506
    %547 = vmatprep.subr.bf16.mxu0 0
    %548 = vmatpush1.bf16.msra.mxu0 %v507
    %549 = vmatprep.subr.bf16.mxu0 0
    %550 = vmatpush1.bf16.msra.mxu0 %v508
    %551 = vmatprep.subr.bf16.mxu0 0
    %552 = vmatpush1.bf16.msra.mxu0 %v509
    %553 = vmatprep.subr.bf16.mxu0 0
    %554 = vmatpush1.bf16.msra.mxu0 %v510
    %555 = vmatprep.subr.bf16.mxu0 0
    %556 = vmatpush1.bf16.msra.mxu0 %v511
    %557 = vmatprep.subr.bf16.mxu0 0
    %558 = vmatpush1.bf16.msra.mxu0 %v512
    %559 = vmatprep.subr.bf16.mxu0 0
    %560 = vmatpush1.bf16.msra.mxu0 %v513
    %561 = vmatprep.subr.bf16.mxu0 0
    %562 = vmatpush1.bf16.msra.mxu0 %v514
    %563 = vmatprep.mubr.bf16.mxu0 %v381
    %564 = vmatmul.mubr.bf16.gmra.mrb[0].mxu0 %v380
    %v565 = vpop.f32.mrb[0].mxu0
    %v566 = vadd.f32 %v433, %v565
    %v567 = vpop.f32.mrb[0].mxu0
    %v568 = vpop.f32.mrb[0].mxu0
    %v569 = vadd.f32 %v433, %v568
    %v570 = vpop.f32.mrb[0].mxu0
    %571 = vmatprep.mubr.bf16.mxu0 %v383
    %572 = vmatmul.mubr.bf16.gmra.mrb[0].mxu0 %v382
    %v573 = vpop.f32.mrb[0].mxu0
    %v574 = vadd.f32 %v433, %v573
    %v575 = vpop.f32.mrb[0].mxu0
    %v576 = vpop.f32.mrb[0].mxu0
    %v577 = vadd.f32 %v433, %v576
    %v578 = vpop.f32.mrb[0].mxu0
    %579 = vmatprep.mubr.bf16.mxu0 %v385
    %580 = vmatmul.mubr.bf16.gmra.mrb[0].mxu0 %v384
    %v581 = vpop.f32.mrb[0].mxu0
    %v582 = vadd.f32 %v433, %v581
    %v583 = vpop.f32.mrb[0].mxu0
    %v584 = vpop.f32.mrb[0].mxu0
    %v585 = vadd.f32 %v433, %v584
    %v586 = vpop.f32.mrb[0].mxu0
    %587 = vmatprep.mubr.bf16.mxu0 %v387
    %588 = vmatmul.mubr.bf16.gmra.mrb[0].mxu0 %v386
    %v589 = vpop.f32.mrb[0].mxu0
    %v590 = vadd.f32 %v433, %v589
    %v591 = vpop.f32.mrb[0].mxu0
    %v592 = vpop.f32.mrb[0].mxu0
    %v593 = vadd.f32 %v433, %v592
    %v594 = vpop.f32.mrb[0].mxu0
    %595 = vmatprep.mubr.bf16.mxu0 %v389
    %596 = vmatmul.mubr.bf16.gmra.mrb[0].mxu0 %v388
    %v597 = vpop.f32.mrb[0].mxu0
    %v598 = vadd.f32 %v433, %v597
    %v599 = vpop.f32.mrb[0].mxu0
    %v600 = vpop.f32.mrb[0].mxu0
    %v601 = vadd.f32 %v433, %v600
    %v602 = vpop.f32.mrb[0].mxu0
    %603 = vmatprep.mubr.bf16.mxu0 %v391
    %604 = vmatmul.mubr.bf16.gmra.mrb[0].mxu0 %v390
    %v605 = vpop.f32.mrb[0].mxu0
    %v606 = vadd.f32 %v433, %v605
    %v607 = vpop.f32.mrb[0].mxu0
    %v608 = vpop.f32.mrb[0].mxu0
    %v609 = vadd.f32 %v433, %v608
    %v610 = vpop.f32.mrb[0].mxu0
    %611 = vmatprep.mubr.bf16.mxu0 %v393
    %612 = vmatmul.mubr.bf16.gmra.mrb[0].mxu0 %v392
    %v613 = vpop.f32.mrb[0].mxu0
    %v614 = vadd.f32 %v433, %v613
    %v615 = vpop.f32.mrb[0].mxu0
    %v616 = vpop.f32.mrb[0].mxu0
    %v617 = vadd.f32 %v433, %v616
    %v618 = vpop.f32.mrb[0].mxu0
    %619 = vmatprep.mubr.bf16.mxu0 %v395
    %620 = vmatmul.mubr.bf16.gmra.mrb[0].mxu0 %v394
    %v621 = vpop.f32.mrb[0].mxu0
    %v622 = vadd.f32 %v433, %v621
    %v623 = vpop.f32.mrb[0].mxu0
    %v624 = vpop.f32.mrb[0].mxu0
    %v625 = vadd.f32 %v433, %v624
    %v626 = vpop.f32.mrb[0].mxu0
    %627 = vdwg.mxu0
    %628 = vst [vmem:[#allocation8] sm:$0xff] %v566
    %629 = vst [vmem:[#allocation8 + $0x8] sm:$0xff] %v569
    %630 = vst [vmem:[#allocation8 + $0x10] sm:$0xff] %v574
    %631 = vst [vmem:[#allocation8 + $0x18] sm:$0xff] %v577
    %632 = vst [vmem:[#allocation8 + $0x20] sm:$0xff] %v582
    %633 = vst [vmem:[#allocation8 + $0x28] sm:$0xff] %v585
    %634 = vst [vmem:[#allocation8 + $0x30] sm:$0xff] %v590
    %635 = vst [vmem:[#allocation8 + $0x38] sm:$0xff] %v593
    %636 = vst [vmem:[#allocation8 + $0x40] sm:$0xff] %v598
    %637 = vst [vmem:[#allocation8 + $0x48] sm:$0xff] %v601
    %638 = vst [vmem:[#allocation8 + $0x50] sm:$0xff] %v606
    %639 = vst [vmem:[#allocation8 + $0x58] sm:$0xff] %v609
    %640 = vst [vmem:[#allocation8 + $0x60] sm:$0xff] %v614
    %641 = vst [vmem:[#allocation8 + $0x68] sm:$0xff] %v617
    %642 = vst [vmem:[#allocation8 + $0x70] sm:$0xff] %v622
    %643 = vst [vmem:[#allocation8 + $0x78] sm:$0xff] %v625
    // Predicated region
    $region34: #{tpu_custom_call.1} parent=1 // pred_check
      _
    $region35: #{tpu_custom_call.1} parent=1 // pred_check_branch
      %645 = sbr.rel (0) target = $region37
    $region36: #{tpu_custom_call.1} parent=1 // pred_region
      %s647 = ssub.s32 2048, 2048
      %648 = vsyncadd [#allocation4], %s647
      %s649 = sshll.u32 [#allocation8], 4
      %s650 = int_to_ptr.vmem [resolvable:$true] %s649
      %655 = dma.vmem_to_hbm [thread:$0]  %s650, 2048, %s5, [#allocation4], 128, 128, 8
    $region37: #{tpu_custom_call.1} parent=1 // pred_fallthru
      _
    // Predicated region
    $region38: #{tpu_custom_call.1} parent=1 // pred_check
      _
    $region39: #{tpu_custom_call.1} parent=1 // pred_check_branch
      %657 = sbr.rel (0) target = $region41
    $region40: #{tpu_custom_call.1} parent=1 // pred_region
      %658 = dma.done [#allocation4], 2048
    $region41: #{tpu_custom_call.1} parent=1 // pred_fallthru
      _
    %659 = vsyncpa [#allocation3], 1
    %660 = vsyncpa [#allocation6], 1
    %661 = vsyncpa [#allocation4], 1

</llo_original>
